<compile_context>
chip_gen: v7x
topology: tpu7x:2x2x1
jax: 0.10.0
libtpu: 0.0.40
codegen_flags: <defaults>
</compile_context>

<pallas_src>
import functools

import jax
import jax.numpy as jnp
from jax import lax
from jax.experimental import pallas as pl
from jax.experimental.pallas import tpu as pltpu

_EPS = 1e-5  # PyTorch BatchNorm2d default eps


def _reused_model_kernel(p_ref, x_ref, o_ref, *, n_pix, n_left):
    """Forward pass on a (3, n_pix) slab.

    p_ref: SMEM f32[18] -> [w(9, out-major), bias(3), gamma(3), beta(3)]
    x_ref: VMEM f32[3, n_pix]   (split-'a' pixels in lanes [0, n_left))
    o_ref: VMEM f32[3, n_pix]
    """
    inv_p = 1.0 / float(n_pix)

    x = [x_ref[c:c + 1, :] for c in range(3)]  # three (1, n_pix) rows

    # conv1 (1x1) as unrolled scalar-broadcast FMAs on the VPU.
    # Bias omitted: it cancels exactly under BN mean subtraction below.
    conv = []
    for c in range(3):
        conv.append(p_ref[3 * c + 0] * x[0]
                    + p_ref[3 * c + 1] * x[1]
                    + p_ref[3 * c + 2] * x[2])

    # BatchNorm2d (training-mode biased batch stats), folded affine, ReLU.
    x1 = []
    for c in range(3):
        mean = jnp.sum(conv[c], axis=1, keepdims=True) * inv_p
        meansq = jnp.sum(conv[c] * conv[c], axis=1, keepdims=True) * inv_p
        var = meansq - mean * mean
        scale = p_ref[12 + c] * lax.rsqrt(var + _EPS)   # gamma / sqrt(var+eps)
        shift = p_ref[15 + c] - scale * mean            # beta - scale*mean
        x1.append(jnp.maximum(scale * conv[c] + shift, 0.0))

    # conv1 applied to the 'a' half + ReLU, then "concat" with the 'b' half.
    # Layout permutation put 'a' in the low lanes, so split/concat is a
    # compile-time-constant lane select.
    lane = lax.broadcasted_iota(jnp.int32, (1, n_pix), 1)
    is_left = lane < n_left
    for c in range(3):
        branch = jnp.maximum(
            p_ref[3 * c + 0] * x1[0]
            + p_ref[3 * c + 1] * x1[1]
            + p_ref[3 * c + 2] * x1[2]
            + p_ref[9 + c],
            0.0,
        )
        o_ref[c:c + 1, :] = jnp.where(is_left, branch, x1[c])


def reused_model_forward(inp, conv_w, conv_b, bn_gamma, bn_beta):
    """inp: NCHW float32 (N, 3, H, 8). Returns NCHW output of same shape."""
    N, C, H, W = inp.shape
    assert C == 3 and W == 8, "this synthetic kernel assumes C=3, W=8"
    Wa = 4                       # torch.split(..., 4, dim=-1)
    P = N * H * W
    Pa = N * H * Wa

    # NCHW -> (C, P) with the split-'a' pixels packed into the low lanes.
    xt = jnp.transpose(inp.astype(jnp.float32), (1, 0, 2, 3))    # (C, N, H, W)
    x_flat = jnp.concatenate(
        [xt[..., :Wa].reshape(C, Pa), xt[..., Wa:].reshape(C, P - Pa)], axis=1)

    # Pack all parameters into one small SMEM-resident array.
    params = jnp.concatenate([
        conv_w.reshape(-1).astype(jnp.float32),    # 9: w[out, in]
        conv_b.reshape(-1).astype(jnp.float32),    # 3
        bn_gamma.reshape(-1).astype(jnp.float32),  # 3
        bn_beta.reshape(-1).astype(jnp.float32),   # 3
    ])                                             # (18,)

    out_flat = pl.pallas_call(
        functools.partial(_reused_model_kernel, n_pix=P, n_left=Pa),
        out_shape=jax.ShapeDtypeStruct((C, P), jnp.float32),
        in_specs=[
            pl.BlockSpec(memory_space=pltpu.MemorySpace.SMEM),
            pl.BlockSpec(memory_space=pltpu.MemorySpace.VMEM),
        ],
        out_specs=pl.BlockSpec(memory_space=pltpu.MemorySpace.VMEM),
    )(params, x_flat)

    # (C, P) -> NCHW, undoing the 'a'/'b' lane packing.
    out_a = out_flat[:, :Pa].reshape(C, N, H, Wa)
    out_b = out_flat[:, Pa:].reshape(C, N, H, W - Wa)
    out = jnp.concatenate([out_a, out_b], axis=-1)   # (C, N, H, W)
    return jnp.transpose(out, (1, 0, 2, 3))


def _reference_forward(inp, conv_w, conv_b, bn_gamma, bn_beta):
    """Pure-JAX reference mirroring the PyTorch forward (training-mode BN)."""
    w2d = conv_w.reshape(3, 3)

    def conv1(t):  # t: NCHW
        return jnp.einsum("oc,nchw->nohw", w2d, t) + conv_b.reshape(1, 3, 1, 1)

    x = conv1(inp)
    mean = jnp.mean(x, axis=(0, 2, 3), keepdims=True)
    var = jnp.mean((x - mean) ** 2, axis=(0, 2, 3), keepdims=True)
    x1 = bn_gamma.reshape(1, 3, 1, 1) * (x - mean) / jnp.sqrt(var + _EPS) \
        + bn_beta.reshape(1, 3, 1, 1)
    x1 = jnp.maximum(x1, 0.0)
    a, b = x1[..., :4], x1[..., 4:8]
    a = jnp.maximum(conv1(a), 0.0)
    return jnp.concatenate([a, b], axis=-1)


if __name__ == "__main__":
    key = jax.random.PRNGKey(0)
    k_in, k_w, k_b, k_g, k_bt = jax.random.split(key, 5)

    # Small shapes consistent with the module: batch=2, channels=3, 8x8 spatial
    inp = jax.random.normal(k_in, (2, 3, 8, 8), dtype=jnp.float32)

    conv_w = jax.random.normal(k_w, (3, 3, 1, 1), dtype=jnp.float32) * 0.5
    conv_b = jax.random.normal(k_b, (3,), dtype=jnp.float32) * 0.1
    bn_gamma = 1.0 + 0.1 * jax.random.normal(k_g, (3,), dtype=jnp.float32)
    bn_beta = 0.1 * jax.random.normal(k_bt, (3,), dtype=jnp.float32)

    out = reused_model_forward(inp, conv_w, conv_b, bn_gamma, bn_beta)
    out = jax.block_until_ready(out)

    ref = _reference_forward(inp, conv_w, conv_b, bn_gamma, bn_beta)
    assert out.shape == (2, 3, 8, 8)
    assert jnp.allclose(out, ref, atol=1e-4, rtol=1e-4)

    print("KERNEL_OK")
</pallas_src>

<mosaic_0001>
module attributes {stable_mosaic.version = 11 : i64} {
  func.func @_reused_model_kernel(%arg0: memref<18xf32, #tpu.memory_space<smem>>, %arg1: memref<3x128xf32, #tpu.memory_space<vmem>>, %arg2: memref<3x128xf32, #tpu.memory_space<vmem>>) attributes {dimension_semantics = [], scalar_prefetch = 0 : i64, scratch_operands = 0 : i64, tpu.core_type = #tpu.core_type<tc>} {
    %c0 = arith.constant 0 : index
    %c0_0 = arith.constant 0 : index
    %0 = vector.load %arg1[%c0, %c0_0] : memref<3x128xf32, #tpu.memory_space<vmem>>, vector<1x128xf32>
    %c1 = arith.constant 1 : index
    %c0_1 = arith.constant 0 : index
    %1 = vector.load %arg1[%c1, %c0_1] : memref<3x128xf32, #tpu.memory_space<vmem>>, vector<1x128xf32>
    %c2 = arith.constant 2 : index
    %c0_2 = arith.constant 0 : index
    %2 = vector.load %arg1[%c2, %c0_2] : memref<3x128xf32, #tpu.memory_space<vmem>>, vector<1x128xf32>
    %c0_3 = arith.constant 0 : index
    %3 = memref.load %arg0[%c0_3] : memref<18xf32, #tpu.memory_space<smem>>
    %4 = vector.broadcast %3 : f32 to vector<1x128xf32>
    %5 = arith.mulf %4, %0 : vector<1x128xf32>
    %c1_4 = arith.constant 1 : index
    %6 = memref.load %arg0[%c1_4] : memref<18xf32, #tpu.memory_space<smem>>
    %7 = vector.broadcast %6 : f32 to vector<1x128xf32>
    %8 = arith.mulf %7, %1 : vector<1x128xf32>
    %9 = arith.addf %5, %8 : vector<1x128xf32>
    %c2_5 = arith.constant 2 : index
    %10 = memref.load %arg0[%c2_5] : memref<18xf32, #tpu.memory_space<smem>>
    %11 = vector.broadcast %10 : f32 to vector<1x128xf32>
    %12 = arith.mulf %11, %2 : vector<1x128xf32>
    %13 = arith.addf %9, %12 : vector<1x128xf32>
    %c3 = arith.constant 3 : index
    %14 = memref.load %arg0[%c3] : memref<18xf32, #tpu.memory_space<smem>>
    %15 = vector.broadcast %14 : f32 to vector<1x128xf32>
    %16 = arith.mulf %15, %0 : vector<1x128xf32>
    %c4 = arith.constant 4 : index
    %17 = memref.load %arg0[%c4] : memref<18xf32, #tpu.memory_space<smem>>
    %18 = vector.broadcast %17 : f32 to vector<1x128xf32>
    %19 = arith.mulf %18, %1 : vector<1x128xf32>
    %20 = arith.addf %16, %19 : vector<1x128xf32>
    %c5 = arith.constant 5 : index
    %21 = memref.load %arg0[%c5] : memref<18xf32, #tpu.memory_space<smem>>
    %22 = vector.broadcast %21 : f32 to vector<1x128xf32>
    %23 = arith.mulf %22, %2 : vector<1x128xf32>
    %24 = arith.addf %20, %23 : vector<1x128xf32>
    %c6 = arith.constant 6 : index
    %25 = memref.load %arg0[%c6] : memref<18xf32, #tpu.memory_space<smem>>
    %26 = vector.broadcast %25 : f32 to vector<1x128xf32>
    %27 = arith.mulf %26, %0 : vector<1x128xf32>
    %c7 = arith.constant 7 : index
    %28 = memref.load %arg0[%c7] : memref<18xf32, #tpu.memory_space<smem>>
    %29 = vector.broadcast %28 : f32 to vector<1x128xf32>
    %30 = arith.mulf %29, %1 : vector<1x128xf32>
    %31 = arith.addf %27, %30 : vector<1x128xf32>
    %c8 = arith.constant 8 : index
    %32 = memref.load %arg0[%c8] : memref<18xf32, #tpu.memory_space<smem>>
    %33 = vector.broadcast %32 : f32 to vector<1x128xf32>
    %34 = arith.mulf %33, %2 : vector<1x128xf32>
    %35 = arith.addf %31, %34 : vector<1x128xf32>
    %cst = arith.constant dense<0.000000e+00> : vector<1xf32>
    %36 = vector.multi_reduction <add>, %13, %cst [1] : vector<1x128xf32> to vector<1xf32>
    %37 = vector.shape_cast %36 : vector<1xf32> to vector<1x1xf32>
    %cst_6 = arith.constant 7.812500e-03 : f32
    %38 = vector.broadcast %cst_6 : f32 to vector<1x1xf32>
    %39 = arith.mulf %37, %38 : vector<1x1xf32>
    %40 = arith.mulf %13, %13 : vector<1x128xf32>
    %cst_7 = arith.constant dense<0.000000e+00> : vector<1xf32>
    %41 = vector.multi_reduction <add>, %40, %cst_7 [1] : vector<1x128xf32> to vector<1xf32>
    %42 = vector.shape_cast %41 : vector<1xf32> to vector<1x1xf32>
    %cst_8 = arith.constant 7.812500e-03 : f32
    %43 = vector.broadcast %cst_8 : f32 to vector<1x1xf32>
    %44 = arith.mulf %42, %43 : vector<1x1xf32>
    %45 = arith.mulf %39, %39 : vector<1x1xf32>
    %46 = arith.subf %44, %45 : vector<1x1xf32>
    %c12 = arith.constant 12 : index
    %47 = memref.load %arg0[%c12] : memref<18xf32, #tpu.memory_space<smem>>
    %cst_9 = arith.constant 9.99999974E-6 : f32
    %48 = vector.broadcast %cst_9 : f32 to vector<1x1xf32>
    %49 = arith.addf %46, %48 : vector<1x1xf32>
    %50 = math.rsqrt %49 : vector<1x1xf32>
    %51 = vector.broadcast %47 : f32 to vector<1x1xf32>
    %52 = arith.mulf %51, %50 : vector<1x1xf32>
    %c15 = arith.constant 15 : index
    %53 = memref.load %arg0[%c15] : memref<18xf32, #tpu.memory_space<smem>>
    %54 = arith.mulf %52, %39 : vector<1x1xf32>
    %55 = vector.broadcast %53 : f32 to vector<1x1xf32>
    %56 = arith.subf %55, %54 : vector<1x1xf32>
    %57 = vector.broadcast %52 : vector<1x1xf32> to vector<1x128xf32>
    %58 = arith.mulf %57, %13 : vector<1x128xf32>
    %59 = vector.broadcast %56 : vector<1x1xf32> to vector<1x128xf32>
    %60 = arith.addf %58, %59 : vector<1x128xf32>
    %cst_10 = arith.constant 0.000000e+00 : f32
    %61 = vector.broadcast %cst_10 : f32 to vector<1x128xf32>
    %62 = arith.maximumf %60, %61 : vector<1x128xf32>
    %cst_11 = arith.constant dense<0.000000e+00> : vector<1xf32>
    %63 = vector.multi_reduction <add>, %24, %cst_11 [1] : vector<1x128xf32> to vector<1xf32>
    %64 = vector.shape_cast %63 : vector<1xf32> to vector<1x1xf32>
    %cst_12 = arith.constant 7.812500e-03 : f32
    %65 = vector.broadcast %cst_12 : f32 to vector<1x1xf32>
    %66 = arith.mulf %64, %65 : vector<1x1xf32>
    %67 = arith.mulf %24, %24 : vector<1x128xf32>
    %cst_13 = arith.constant dense<0.000000e+00> : vector<1xf32>
    %68 = vector.multi_reduction <add>, %67, %cst_13 [1] : vector<1x128xf32> to vector<1xf32>
    %69 = vector.shape_cast %68 : vector<1xf32> to vector<1x1xf32>
    %cst_14 = arith.constant 7.812500e-03 : f32
    %70 = vector.broadcast %cst_14 : f32 to vector<1x1xf32>
    %71 = arith.mulf %69, %70 : vector<1x1xf32>
    %72 = arith.mulf %66, %66 : vector<1x1xf32>
    %73 = arith.subf %71, %72 : vector<1x1xf32>
    %c13 = arith.constant 13 : index
    %74 = memref.load %arg0[%c13] : memref<18xf32, #tpu.memory_space<smem>>
    %cst_15 = arith.constant 9.99999974E-6 : f32
    %75 = vector.broadcast %cst_15 : f32 to vector<1x1xf32>
    %76 = arith.addf %73, %75 : vector<1x1xf32>
    %77 = math.rsqrt %76 : vector<1x1xf32>
    %78 = vector.broadcast %74 : f32 to vector<1x1xf32>
    %79 = arith.mulf %78, %77 : vector<1x1xf32>
    %c16 = arith.constant 16 : index
    %80 = memref.load %arg0[%c16] : memref<18xf32, #tpu.memory_space<smem>>
    %81 = arith.mulf %79, %66 : vector<1x1xf32>
    %82 = vector.broadcast %80 : f32 to vector<1x1xf32>
    %83 = arith.subf %82, %81 : vector<1x1xf32>
    %84 = vector.broadcast %79 : vector<1x1xf32> to vector<1x128xf32>
    %85 = arith.mulf %84, %24 : vector<1x128xf32>
    %86 = vector.broadcast %83 : vector<1x1xf32> to vector<1x128xf32>
    %87 = arith.addf %85, %86 : vector<1x128xf32>
    %cst_16 = arith.constant 0.000000e+00 : f32
    %88 = vector.broadcast %cst_16 : f32 to vector<1x128xf32>
    %89 = arith.maximumf %87, %88 : vector<1x128xf32>
    %cst_17 = arith.constant dense<0.000000e+00> : vector<1xf32>
    %90 = vector.multi_reduction <add>, %35, %cst_17 [1] : vector<1x128xf32> to vector<1xf32>
    %91 = vector.shape_cast %90 : vector<1xf32> to vector<1x1xf32>
    %cst_18 = arith.constant 7.812500e-03 : f32
    %92 = vector.broadcast %cst_18 : f32 to vector<1x1xf32>
    %93 = arith.mulf %91, %92 : vector<1x1xf32>
    %94 = arith.mulf %35, %35 : vector<1x128xf32>
    %cst_19 = arith.constant dense<0.000000e+00> : vector<1xf32>
    %95 = vector.multi_reduction <add>, %94, %cst_19 [1] : vector<1x128xf32> to vector<1xf32>
    %96 = vector.shape_cast %95 : vector<1xf32> to vector<1x1xf32>
    %cst_20 = arith.constant 7.812500e-03 : f32
    %97 = vector.broadcast %cst_20 : f32 to vector<1x1xf32>
    %98 = arith.mulf %96, %97 : vector<1x1xf32>
    %99 = arith.mulf %93, %93 : vector<1x1xf32>
    %100 = arith.subf %98, %99 : vector<1x1xf32>
    %c14 = arith.constant 14 : index
    %101 = memref.load %arg0[%c14] : memref<18xf32, #tpu.memory_space<smem>>
    %cst_21 = arith.constant 9.99999974E-6 : f32
    %102 = vector.broadcast %cst_21 : f32 to vector<1x1xf32>
    %103 = arith.addf %100, %102 : vector<1x1xf32>
    %104 = math.rsqrt %103 : vector<1x1xf32>
    %105 = vector.broadcast %101 : f32 to vector<1x1xf32>
    %106 = arith.mulf %105, %104 : vector<1x1xf32>
    %c17 = arith.constant 17 : index
    %107 = memref.load %arg0[%c17] : memref<18xf32, #tpu.memory_space<smem>>
    %108 = arith.mulf %106, %93 : vector<1x1xf32>
    %109 = vector.broadcast %107 : f32 to vector<1x1xf32>
    %110 = arith.subf %109, %108 : vector<1x1xf32>
    %111 = vector.broadcast %106 : vector<1x1xf32> to vector<1x128xf32>
    %112 = arith.mulf %111, %35 : vector<1x128xf32>
    %113 = vector.broadcast %110 : vector<1x1xf32> to vector<1x128xf32>
    %114 = arith.addf %112, %113 : vector<1x128xf32>
    %cst_22 = arith.constant 0.000000e+00 : f32
    %115 = vector.broadcast %cst_22 : f32 to vector<1x128xf32>
    %116 = arith.maximumf %114, %115 : vector<1x128xf32>
    %117 = tpu.iota {dimensions = array<i32: 1>} : vector<1x128xi32>
    %c64_i32 = arith.constant 64 : i32
    %118 = vector.broadcast %c64_i32 : i32 to vector<1x128xi32>
    %119 = arith.cmpi slt, %117, %118 : vector<1x128xi32>
    %c0_23 = arith.constant 0 : index
    %120 = memref.load %arg0[%c0_23] : memref<18xf32, #tpu.memory_space<smem>>
    %121 = vector.broadcast %120 : f32 to vector<1x128xf32>
    %122 = arith.mulf %121, %62 : vector<1x128xf32>
    %c1_24 = arith.constant 1 : index
    %123 = memref.load %arg0[%c1_24] : memref<18xf32, #tpu.memory_space<smem>>
    %124 = vector.broadcast %123 : f32 to vector<1x128xf32>
    %125 = arith.mulf %124, %89 : vector<1x128xf32>
    %126 = arith.addf %122, %125 : vector<1x128xf32>
    %c2_25 = arith.constant 2 : index
    %127 = memref.load %arg0[%c2_25] : memref<18xf32, #tpu.memory_space<smem>>
    %128 = vector.broadcast %127 : f32 to vector<1x128xf32>
    %129 = arith.mulf %128, %116 : vector<1x128xf32>
    %130 = arith.addf %126, %129 : vector<1x128xf32>
    %c9 = arith.constant 9 : index
    %131 = memref.load %arg0[%c9] : memref<18xf32, #tpu.memory_space<smem>>
    %132 = vector.broadcast %131 : f32 to vector<1x128xf32>
    %133 = arith.addf %130, %132 : vector<1x128xf32>
    %cst_26 = arith.constant 0.000000e+00 : f32
    %134 = vector.broadcast %cst_26 : f32 to vector<1x128xf32>
    %135 = arith.maximumf %133, %134 : vector<1x128xf32>
    %136 = arith.select %119, %135, %62 : vector<1x128xi1>, vector<1x128xf32>
    %c0_27 = arith.constant 0 : index
    %c0_28 = arith.constant 0 : index
    %137 = vector.load %arg2[%c0_27, %c0_28] : memref<3x128xf32, #tpu.memory_space<vmem>>, vector<1x128xf32>
    tpu.vector_store %arg2[%c0_27, %c0_28], %136 {strides = array<i32>} : memref<3x128xf32, #tpu.memory_space<vmem>>, vector<1x128xf32>,
    %c3_29 = arith.constant 3 : index
    %138 = memref.load %arg0[%c3_29] : memref<18xf32, #tpu.memory_space<smem>>
    %139 = vector.broadcast %138 : f32 to vector<1x128xf32>
    %140 = arith.mulf %139, %62 : vector<1x128xf32>
    %c4_30 = arith.constant 4 : index
    %141 = memref.load %arg0[%c4_30] : memref<18xf32, #tpu.memory_space<smem>>
    %142 = vector.broadcast %141 : f32 to vector<1x128xf32>
    %143 = arith.mulf %142, %89 : vector<1x128xf32>
    %144 = arith.addf %140, %143 : vector<1x128xf32>
    %c5_31 = arith.constant 5 : index
    %145 = memref.load %arg0[%c5_31] : memref<18xf32, #tpu.memory_space<smem>>
    %146 = vector.broadcast %145 : f32 to vector<1x128xf32>
    %147 = arith.mulf %146, %116 : vector<1x128xf32>
    %148 = arith.addf %144, %147 : vector<1x128xf32>
    %c10 = arith.constant 10 : index
    %149 = memref.load %arg0[%c10] : memref<18xf32, #tpu.memory_space<smem>>
    %150 = vector.broadcast %149 : f32 to vector<1x128xf32>
    %151 = arith.addf %148, %150 : vector<1x128xf32>
    %cst_32 = arith.constant 0.000000e+00 : f32
    %152 = vector.broadcast %cst_32 : f32 to vector<1x128xf32>
    %153 = arith.maximumf %151, %152 : vector<1x128xf32>
    %154 = arith.select %119, %153, %89 : vector<1x128xi1>, vector<1x128xf32>
    %c1_33 = arith.constant 1 : index
    %c0_34 = arith.constant 0 : index
    %155 = vector.load %arg2[%c1_33, %c0_34] : memref<3x128xf32, #tpu.memory_space<vmem>>, vector<1x128xf32>
    tpu.vector_store %arg2[%c1_33, %c0_34], %154 {strides = array<i32>} : memref<3x128xf32, #tpu.memory_space<vmem>>, vector<1x128xf32>,
    %c6_35 = arith.constant 6 : index
    %156 = memref.load %arg0[%c6_35] : memref<18xf32, #tpu.memory_space<smem>>
    %157 = vector.broadcast %156 : f32 to vector<1x128xf32>
    %158 = arith.mulf %157, %62 : vector<1x128xf32>
    %c7_36 = arith.constant 7 : index
    %159 = memref.load %arg0[%c7_36] : memref<18xf32, #tpu.memory_space<smem>>
    %160 = vector.broadcast %159 : f32 to vector<1x128xf32>
    %161 = arith.mulf %160, %89 : vector<1x128xf32>
    %162 = arith.addf %158, %161 : vector<1x128xf32>
    %c8_37 = arith.constant 8 : index
    %163 = memref.load %arg0[%c8_37] : memref<18xf32, #tpu.memory_space<smem>>
    %164 = vector.broadcast %163 : f32 to vector<1x128xf32>
    %165 = arith.mulf %164, %116 : vector<1x128xf32>
    %166 = arith.addf %162, %165 : vector<1x128xf32>
    %c11 = arith.constant 11 : index
    %167 = memref.load %arg0[%c11] : memref<18xf32, #tpu.memory_space<smem>>
    %168 = vector.broadcast %167 : f32 to vector<1x128xf32>
    %169 = arith.addf %166, %168 : vector<1x128xf32>
    %cst_38 = arith.constant 0.000000e+00 : f32
    %170 = vector.broadcast %cst_38 : f32 to vector<1x128xf32>
    %171 = arith.maximumf %169, %170 : vector<1x128xf32>
    %172 = arith.select %119, %171, %116 : vector<1x128xi1>, vector<1x128xf32>
    %c2_39 = arith.constant 2 : index
    %c0_40 = arith.constant 0 : index
    %173 = vector.load %arg2[%c2_39, %c0_40] : memref<3x128xf32, #tpu.memory_space<vmem>>, vector<1x128xf32>
    tpu.vector_store %arg2[%c2_39, %c0_40], %172 {strides = array<i32>} : memref<3x128xf32, #tpu.memory_space<vmem>>, vector<1x128xf32>,
    return
  }
}

</mosaic_0001>

<llo_original>
// kernel: tpu_custom_call.1
$region0: #{tpu_custom_call.1}
  #allocation0 [shape = 'u32[]', space=smem, size = 0x4, offset = 0x4, fixed_abs, tag = 'smem constant byte address 0x4 - core index']
  #allocation1 [shape = 'u32[144,128]{1,0:T(1,128)}', space=vmem, size = 0x12000, scoped, tag = 'internal scratch']
  %s0 = inlined_call_operand.hbm [shape: f32[18], index: 0, kind: input, shape index: {}]
  %s1 = inlined_call_operand.hbm [shape: f32[3,128], index: 1, kind: input, shape index: {}]
  %s2 = inlined_call_operand.hbm [shape: f32[3,128], index: 2, kind: output, shape index: {}]
  %s3 = sld [smem:[#allocation0]]
  $region26: #{tpu_custom_call.1} parent=0
    _
  %s5 = ssub.s32 1, %s3
  %s6 = scalar_select 0, %s5, %s3
  $region1: #{tpu_custom_call.1} parent=0
    #allocation2 [shape = 'u8[512]{0}', space=smem, size = 0x200, scoped, tag = 'input window, operand 0, single buffered']
    #allocation3 [shape = 's32[1]{0}', space=sflag, size = 0x4, scoped, tag = 'scoped memory for tpu_custom_call.1']
    #allocation4 [shape = 's32[1]{0}', space=sflag, size = 0x4, scoped, tag = 'scoped memory for tpu_custom_call.1']
    #allocation5 [shape = 's32[1]{0}', space=sflag, size = 0x4, scoped, tag = 'scoped memory for tpu_custom_call.1']
    #allocation6 [shape = 'u8[2048]{0}', space=vmem, size = 0x800, scoped, tag = 'input window, operand 1, single buffered']
    #allocation7 [shape = 'u8[2048]{0}', space=vmem, size = 0x800, scoped, tag = 'output window, operand 0, single buffered']
    %7 = vsyncpa [#allocation5], 0
    %8 = vsyncpa [#allocation3], 0
    %9 = vsyncpa [#allocation4], 0
    // Predicated region
    $region2: #{tpu_custom_call.1} parent=1 // pred_check
      _
    $region3: #{tpu_custom_call.1} parent=1 // pred_check_branch
      %11 = sbr.rel (0) target = $region5
    $region4: #{tpu_custom_call.1} parent=1 // pred_region
      %s13 = ssub.s32 16, 16
      %14 = vsyncadd [#allocation5], %s13
      %17 = dma.hbm_to_smem %s0, 16, [#allocation2], [#allocation5]
    $region5: #{tpu_custom_call.1} parent=1 // pred_fallthru
      _
    // Predicated region
    $region6: #{tpu_custom_call.1} parent=1 // pred_check
      _
    $region7: #{tpu_custom_call.1} parent=1 // pred_check_branch
      %19 = sbr.rel (0) target = $region9
    $region8: #{tpu_custom_call.1} parent=1 // pred_region
      %s21 = ssub.s32 64, 64
      %22 = vsyncadd [#allocation3], %s21
      %s24 = sshll.u32 [#allocation6], 4
      %s25 = int_to_ptr.vmem [resolvable:$true] %s24
      %27 = dma.hbm_to_vmem [thread:$0]  %s1, 64, %s25, [#allocation3]
    $region9: #{tpu_custom_call.1} parent=1 // pred_fallthru
      _
    // Predicated region
    $region10: #{tpu_custom_call.1} parent=1 // pred_check
      _
    $region11: #{tpu_custom_call.1} parent=1 // pred_check_branch
      %29 = sbr.rel (0) target = $region13
    $region12: #{tpu_custom_call.1} parent=1 // pred_region
      %30 = dma.done [#allocation5], 16
    $region13: #{tpu_custom_call.1} parent=1 // pred_fallthru
      _
    // Predicated region
    $region14: #{tpu_custom_call.1} parent=1 // pred_check
      _
    $region15: #{tpu_custom_call.1} parent=1 // pred_check_branch
      %32 = sbr.rel (0) target = $region17
    $region16: #{tpu_custom_call.1} parent=1 // pred_region
      %33 = dma.done [#allocation3], 64
    $region17: #{tpu_custom_call.1} parent=1 // pred_fallthru
      _
    %34 = sfence
    %v35 = vld [vmem:[#allocation6] sm:$0x1]
    %v36 = vld [vmem:[#allocation6 + $0x1] sm:$0x1]
    %v37 = vld [vmem:[#allocation6 + $0x2] sm:$0x1]
    %s38 = sld [smem:[#allocation2]]
    %v39 = vstv %s38
    %v40 = vmul.f32 %v39, %v35
    %s41 = sld [smem:[#allocation2 + $0x1]]
    %v42 = vstv %s41
    %v43 = vmul.f32 %v42, %v36
    %v44 = vadd.f32 %v40, %v43
    %s45 = sld [smem:[#allocation2 + $0x2]]
    %v46 = vstv %s45
    %v47 = vmul.f32 %v46, %v37
    %v48 = vadd.f32 %v44, %v47
    %s49 = sld [smem:[#allocation2 + $0x3]]
    %v50 = vstv %s49
    %v51 = vmul.f32 %v50, %v35
    %s52 = sld [smem:[#allocation2 + $0x4]]
    %v53 = vstv %s52
    %v54 = vmul.f32 %v53, %v36
    %v55 = vadd.f32 %v51, %v54
    %s56 = sld [smem:[#allocation2 + $0x5]]
    %v57 = vstv %s56
    %v58 = vmul.f32 %v57, %v37
    %v59 = vadd.f32 %v55, %v58
    %s60 = sld [smem:[#allocation2 + $0x6]]
    %v61 = vstv %s60
    %v62 = vmul.f32 %v61, %v35
    %s63 = sld [smem:[#allocation2 + $0x7]]
    %v64 = vstv %s63
    %v65 = vmul.f32 %v64, %v36
    %v66 = vadd.f32 %v62, %v65
    %s67 = sld [smem:[#allocation2 + $0x8]]
    %v68 = vstv %s67
    %v69 = vmul.f32 %v68, %v37
    %v70 = vadd.f32 %v66, %v69
    %vm71 = vcmask 1040384
    %v72 = vsel %vm71, %v48, 0.0
    %73 = vadd.xlane.f32.xlu0 %v72
    %v74 = vpop.xlane.xlu0 %73
    %v75 = vmul.f32 %v74, 0.0078125
    %v76 = vmul.f32 %v48, %v48
    %v77 = vsel %vm71, %v76, 0.0
    %78 = vadd.xlane.f32.xlu0 %v77
    %v79 = vpop.xlane.xlu0 %78
    %v80 = vmul.f32 %v79, 0.0078125
    %v81 = vmul.f32 %v75, %v75
    %v82 = vsub.f32 %v80, %v81
    %s83 = sld [smem:[#allocation2 + $0xc]]
    %v84 = vadd.f32 %v82, 1e-05
    %v85 = vrsqrt.pop %v84
    %v86 = vstv %s83
    %v87 = vmul.f32 %v86, %v85
    %s88 = sld [smem:[#allocation2 + $0xf]]
    %v89 = vmul.f32 %v87, %v75
    %v90 = vstv %s88
    %v91 = vsub.f32 %v90, %v89
    %v92 = vmul.f32 %v87, %v48
    %v93 = vadd.f32 %v92, %v91
    %v94 = vmax.f32 %v93, 0.0
    %v95 = vsel %vm71, %v59, 0.0
    %96 = vadd.xlane.f32.xlu0 %v95
    %v97 = vpop.xlane.xlu0 %96
    %v98 = vmul.f32 %v97, 0.0078125
    %v99 = vmul.f32 %v59, %v59
    %v100 = vsel %vm71, %v99, 0.0
    %101 = vadd.xlane.f32.xlu0 %v100
    %v102 = vpop.xlane.xlu0 %101
    %v103 = vmul.f32 %v102, 0.0078125
    %v104 = vmul.f32 %v98, %v98
    %v105 = vsub.f32 %v103, %v104
    %s106 = sld [smem:[#allocation2 + $0xd]]
    %v107 = vadd.f32 %v105, 1e-05
    %v108 = vrsqrt.pop %v107
    %v109 = vstv %s106
    %v110 = vmul.f32 %v109, %v108
    %s111 = sld [smem:[#allocation2 + $0x10]]
    %v112 = vmul.f32 %v110, %v98
    %v113 = vstv %s111
    %v114 = vsub.f32 %v113, %v112
    %v115 = vmul.f32 %v110, %v59
    %v116 = vadd.f32 %v115, %v114
    %v117 = vmax.f32 %v116, 0.0
    %v118 = vsel %vm71, %v70, 0.0
    %119 = vadd.xlane.f32.xlu0 %v118
    %v120 = vpop.xlane.xlu0 %119
    %v121 = vmul.f32 %v120, 0.0078125
    %v122 = vmul.f32 %v70, %v70
    %v123 = vsel %vm71, %v122, 0.0
    %124 = vadd.xlane.f32.xlu0 %v123
    %v125 = vpop.xlane.xlu0 %124
    %v126 = vmul.f32 %v125, 0.0078125
    %v127 = vmul.f32 %v121, %v121
    %v128 = vsub.f32 %v126, %v127
    %s129 = sld [smem:[#allocation2 + $0xe]]
    %v130 = vadd.f32 %v128, 1e-05
    %v131 = vrsqrt.pop %v130
    %v132 = vstv %s129
    %v133 = vmul.f32 %v132, %v131
    %s134 = sld [smem:[#allocation2 + $0x11]]
    %v135 = vmul.f32 %v133, %v121
    %v136 = vstv %s134
    %v137 = vsub.f32 %v136, %v135
    %v138 = vmul.f32 %v133, %v70
    %v139 = vadd.f32 %v138, %v137
    %v140 = vmax.f32 %v139, 0.0
    %v141 = vlaneseq
    %v142 = vand.u32 %v141, 127
    %vm143 = vcmp.lt.s32.totalorder %v142, 64
    %v144 = vmul.f32 %v39, %v94
    %v145 = vmul.f32 %v42, %v117
    %v146 = vadd.f32 %v144, %v145
    %v147 = vmul.f32 %v46, %v140
    %v148 = vadd.f32 %v146, %v147
    %s149 = sld [smem:[#allocation2 + $0x9]]
    %v150 = vstv %s149
    %v151 = vadd.f32 %v148, %v150
    %v152 = vmax.f32 %v151, 0.0
    %v153 = vsel %vm143, %v152, %v94
    %154 = vst [vmem:[#allocation7] sm:$0x1] %v153
    %s155 = sld [smem:[#allocation2 + $0x3]]
    %v156 = vstv %s155
    %v157 = vmul.f32 %v156, %v94
    %s158 = sld [smem:[#allocation2 + $0x4]]
    %v159 = vstv %s158
    %v160 = vmul.f32 %v159, %v117
    %v161 = vadd.f32 %v157, %v160
    %s162 = sld [smem:[#allocation2 + $0x5]]
    %v163 = vstv %s162
    %v164 = vmul.f32 %v163, %v140
    %v165 = vadd.f32 %v161, %v164
    %s166 = sld [smem:[#allocation2 + $0xa]]
    %v167 = vstv %s166
    %v168 = vadd.f32 %v165, %v167
    %v169 = vmax.f32 %v168, 0.0
    %v170 = vsel %vm143, %v169, %v117
    %171 = vst [vmem:[#allocation7 + $0x1] sm:$0x1] %v170
    %s172 = sld [smem:[#allocation2 + $0x6]]
    %v173 = vstv %s172
    %v174 = vmul.f32 %v173, %v94
    %s175 = sld [smem:[#allocation2 + $0x7]]
    %v176 = vstv %s175
    %v177 = vmul.f32 %v176, %v117
    %v178 = vadd.f32 %v174, %v177
    %s179 = sld [smem:[#allocation2 + $0x8]]
    %v180 = vstv %s179
    %v181 = vmul.f32 %v180, %v140
    %v182 = vadd.f32 %v178, %v181
    %s183 = sld [smem:[#allocation2 + $0xb]]
    %v184 = vstv %s183
    %v185 = vadd.f32 %v182, %v184
    %v186 = vmax.f32 %v185, 0.0
    %v187 = vsel %vm143, %v186, %v140
    %188 = vst [vmem:[#allocation7 + $0x2] sm:$0x1] %v187
    // Predicated region
    $region18: #{tpu_custom_call.1} parent=1 // pred_check
      _
    $region19: #{tpu_custom_call.1} parent=1 // pred_check_branch
      %190 = sbr.rel (0) target = $region21
    $region20: #{tpu_custom_call.1} parent=1 // pred_region
      %s192 = ssub.s32 64, 64
      %193 = vsyncadd [#allocation4], %s192
      %s195 = sshll.u32 [#allocation7], 4
      %s196 = int_to_ptr.vmem [resolvable:$true] %s195
      %198 = dma.vmem_to_hbm [thread:$0]  %s196, 64, %s2, [#allocation4]
    $region21: #{tpu_custom_call.1} parent=1 // pred_fallthru
      _
    // Predicated region
    $region22: #{tpu_custom_call.1} parent=1 // pred_check
      _
    $region23: #{tpu_custom_call.1} parent=1 // pred_check_branch
      %200 = sbr.rel (0) target = $region25
    $region24: #{tpu_custom_call.1} parent=1 // pred_region
      %201 = dma.done [#allocation4], 64
    $region25: #{tpu_custom_call.1} parent=1 // pred_fallthru
      _
    %202 = vsyncpa [#allocation3], 1
    %203 = vsyncpa [#allocation4], 1
    %204 = vsyncpa [#allocation5], 1

</llo_original>
